<compile_context>
chip_gen: v7x
topology: tpu7x:2x2x1
jax: 0.10.0
libtpu: 0.0.40
codegen_flags: <defaults>
</compile_context>

<pallas_src>
import functools

import jax
import jax.numpy as jnp
from jax.experimental import pallas as pl
from jax.experimental.pallas import tpu as pltpu

_LANE = 128
_SUB_F32 = 8
# ~2 MiB (f32) per input block: big enough that the ~0.35 us per-grid-step
# overhead is a few percent of the DMA time, small enough for the 32 MiB
# scoped VMEM limit on all of v5e / v6e / v7x.
_TARGET_BLOCK_ELEMS = (2 * 1024 * 1024) // 4


def _loss_block(y_pred_ref, y_true_ref, scale_ref):
    """Elementwise Laplacian NLL on one (TR, 128) block (f32 math)."""
    scale = scale_ref[...].astype(jnp.float32)
    inv_scale = pl.reciprocal(scale, approx=False)        # EUP
    log_s = jnp.log(0.5 * scale)                           # EUP
    mae = jnp.abs(y_true_ref[...].astype(jnp.float32)
                  - y_pred_ref[...].astype(jnp.float32))   # VPU
    return log_s + mae * inv_scale


def _nll_none_kernel(y_pred_ref, y_true_ref, scale_ref, loss_ref):
    loss_ref[...] = _loss_block(y_pred_ref, y_true_ref, scale_ref).astype(loss_ref.dtype)


def _nll_partial_kernel(y_pred_ref, y_true_ref, scale_ref, part_ref):
    # Per-tile, per-lane partial sums: collapse the (TR, 128) block into one
    # (8, 128) block by summing groups of 8 sublanes (pure vector adds).  The
    # wrapper finishes with a single dense jnp.sum over all partial blocks.
    loss = _loss_block(y_pred_ref, y_true_ref, scale_ref)   # (TR, 128) f32
    tr = loss.shape[0]
    part_ref[...] = jnp.sum(loss.reshape(tr // _SUB_F32, _SUB_F32, _LANE), axis=0)


def _round_up(x, m):
    return -(-x // m) * m


def _cdiv(a, b):
    return -(-a // b)


def _sublane_multiple(dtype):
    # Packed dtypes need more sublanes per native tile: f32 -> 8, bf16 -> 16, i8 -> 32.
    return max(8, 32 // jnp.dtype(dtype).itemsize)


@functools.partial(jax.jit, static_argnames=("reduction",))
def laplacian_nll(y_pred, y_true, scale, reduction="mean"):
    assert reduction in ("mean", "sum", "none")
    B = y_pred.shape[0]
    N = y_pred.size
    D = N // B
    out_dtype = jnp.result_type(y_pred.dtype, y_true.dtype, scale.dtype)

    # Flatten in natural row-major order (free) -- no transposes.
    yp = y_pred.reshape(N)
    yt = y_true.reshape(N)
    # One cheap B -> B*D expansion so scale is a third lane-dense input.
    sc = jnp.repeat(scale.reshape(-1), D)

    # --- Tile selection -------------------------------------------------
    sub = max(_sublane_multiple(yp.dtype), _sublane_multiple(yt.dtype),
              _sublane_multiple(sc.dtype), _SUB_F32)
    grain = sub * _LANE                                  # minimal legal tile
    n_grain = _cdiv(N, grain)
    max_tile_grains = max(1, _TARGET_BLOCK_ELEMS // grain)
    if n_grain >= 2:
        # Guarantee >= 2 tiles so the "parallel" axis can shard over the two
        # TensorCores on v7x (harmless on single-TC v5e/v6e).
        max_tile_grains = min(max_tile_grains, _cdiv(n_grain, 2))
    tile_grains = min(max_tile_grains, n_grain)
    tile_elems = tile_grains * grain
    num_tiles = _cdiv(n_grain, tile_grains)
    n_pad_total = num_tiles * tile_elems

    pad = n_pad_total - N
    if pad:
        yp = jnp.pad(yp, (0, pad))
        yt = jnp.pad(yt, (0, pad))
        # scale=2.0, data=0.0 in padding -> loss contribution exactly 0.
        sc = jnp.pad(sc, (0, pad), constant_values=2.0)

    rows = n_pad_total // _LANE
    tr = tile_elems // _LANE
    yp2 = yp.reshape(rows, _LANE)
    yt2 = yt.reshape(rows, _LANE)
    sc2 = sc.reshape(rows, _LANE)

    data_spec = pl.BlockSpec((tr, _LANE), lambda i: (i, 0))
    in_specs = [data_spec, data_spec, data_spec]
    cparams = pltpu.CompilerParams(
        dimension_semantics=("parallel",),
        vmem_limit_bytes=32 * 1024 * 1024,
    )

    if reduction == "none":
        loss2 = pl.pallas_call(
            _nll_none_kernel,
            out_shape=jax.ShapeDtypeStruct((rows, _LANE), out_dtype),
            grid_spec=pltpu.PrefetchScalarGridSpec(
                num_scalar_prefetch=0,
                grid=(num_tiles,),
                in_specs=in_specs,
                out_specs=pl.BlockSpec((tr, _LANE), lambda i: (i, 0)),
            ),
            compiler_params=cparams,
        )(yp2, yt2, sc2)
        # Free/cheap un-flatten back to the caller's (B, D) layout.
        return loss2.reshape(-1)[:N].reshape(y_pred.shape)

    parts = pl.pallas_call(
        _nll_partial_kernel,
        out_shape=jax.ShapeDtypeStruct((num_tiles * _SUB_F32, _LANE), jnp.float32),
        grid_spec=pltpu.PrefetchScalarGridSpec(
            num_scalar_prefetch=0,
            grid=(num_tiles,),
            in_specs=in_specs,
            out_specs=pl.BlockSpec((_SUB_F32, _LANE), lambda i: (i, 0)),
        ),
        compiler_params=cparams,
    )(yp2, yt2, sc2)

    total = jnp.sum(parts)                               # dense epilogue reduce
    if reduction == "sum":
        return total.astype(out_dtype)
    return (total / N).astype(out_dtype)                 # mean over true B*D


def _reference(y_pred, y_true, scale, reduction="mean"):
    log_s = jnp.log(0.5 * scale).reshape(-1, 1)
    mae = jnp.abs(y_true - y_pred)
    loss = log_s + mae / scale.reshape(-1, 1)
    if reduction == "mean":
        return jnp.mean(loss)
    if reduction == "sum":
        return jnp.sum(loss)
    return loss


if __name__ == "__main__":
    key = jax.random.PRNGKey(0)
    k1, k2, k3 = jax.random.split(key, 3)

    B, D = 16, 2                                         # gaze (yaw, pitch) style output
    y_pred = jax.random.normal(k1, (B, D), dtype=jnp.float32)
    y_true = jax.random.normal(k2, (B, D), dtype=jnp.float32)
    scale = jax.random.uniform(k3, (B,), dtype=jnp.float32, minval=0.2, maxval=2.0)

    out_mean = jax.block_until_ready(laplacian_nll(y_pred, y_true, scale, reduction="mean"))
    out_sum = jax.block_until_ready(laplacian_nll(y_pred, y_true, scale, reduction="sum"))
    out_none = jax.block_until_ready(laplacian_nll(y_pred, y_true, scale, reduction="none"))

    ref_mean = _reference(y_pred, y_true, scale, "mean")
    ref_sum = _reference(y_pred, y_true, scale, "sum")
    ref_none = _reference(y_pred, y_true, scale, "none")

    assert out_none.shape == (B, D)
    assert jnp.allclose(out_mean, ref_mean, atol=1e-5, rtol=1e-5), (out_mean, ref_mean)
    assert jnp.allclose(out_sum, ref_sum, atol=1e-4, rtol=1e-5), (out_sum, ref_sum)
    assert jnp.allclose(out_none, ref_none, atol=1e-5, rtol=1e-5)

    print("KERNEL_OK")
</pallas_src>

<mosaic_0001>
module attributes {stable_mosaic.version = 11 : i64} {
  func.func @_nll_partial_kernel(%arg0: i32, %arg1: memref<8x128xf32, #tpu.memory_space<vmem>>, %arg2: memref<8x128xf32, #tpu.memory_space<vmem>>, %arg3: memref<8x128xf32, #tpu.memory_space<vmem>>, %arg4: memref<8x128xf32, #tpu.memory_space<vmem>>) attributes {dimension_semantics = [#tpu.dimension_semantics<parallel>], iteration_bounds = array<i64: 1>, scalar_prefetch = 0 : i64, scratch_operands = 0 : i64, tpu.core_type = #tpu.core_type<tc>, window_params = [{transform_indices = @transform_0, window_bounds = array<i64: 8, 128>}, {transform_indices = @transform_1, window_bounds = array<i64: 8, 128>}, {transform_indices = @transform_2, window_bounds = array<i64: 8, 128>}, {transform_indices = @transform_3, window_bounds = array<i64: 8, 128>}]} {
    %c0 = arith.constant 0 : index
    %c0_0 = arith.constant 0 : index
    %0 = vector.load %arg3[%c0, %c0_0] : memref<8x128xf32, #tpu.memory_space<vmem>>, vector<8x128xf32>
    %1 = tpu.reciprocal %0 : vector<8x128xf32> -> vector<8x128xf32>
    %cst = arith.constant 5.000000e-01 : f32
    %2 = vector.broadcast %cst : f32 to vector<8x128xf32>
    %3 = arith.mulf %2, %0 : vector<8x128xf32>
    %4 = math.log %3 : vector<8x128xf32>
    %c0_1 = arith.constant 0 : index
    %c0_2 = arith.constant 0 : index
    %5 = vector.load %arg2[%c0_1, %c0_2] : memref<8x128xf32, #tpu.memory_space<vmem>>, vector<8x128xf32>
    %c0_3 = arith.constant 0 : index
    %c0_4 = arith.constant 0 : index
    %6 = vector.load %arg1[%c0_3, %c0_4] : memref<8x128xf32, #tpu.memory_space<vmem>>, vector<8x128xf32>
    %7 = arith.subf %5, %6 : vector<8x128xf32>
    %8 = math.absf %7 : vector<8x128xf32>
    %9 = arith.mulf %8, %1 : vector<8x128xf32>
    %10 = arith.addf %4, %9 : vector<8x128xf32>
    %11 = vector.shape_cast %10 : vector<8x128xf32> to vector<1x8x128xf32>
    %cst_5 = arith.constant dense<0.000000e+00> : vector<8x128xf32>
    %12 = vector.multi_reduction <add>, %11, %cst_5 [0] : vector<1x8x128xf32> to vector<8x128xf32>
    %c0_6 = arith.constant 0 : index
    %c0_7 = arith.constant 0 : index
    %13 = vector.load %arg4[%c0_6, %c0_7] : memref<8x128xf32, #tpu.memory_space<vmem>>, vector<8x128xf32>
    tpu.vector_store %arg4[%c0_6, %c0_7], %12 {strides = array<i32>} : memref<8x128xf32, #tpu.memory_space<vmem>>, vector<8x128xf32>,
    return
  }
  func.func @transform_0(%arg0: i32) -> (i32, i32) {
    %c0_i32 = arith.constant 0 : i32
    %c0_i32_0 = arith.constant 0 : i32
    return %arg0, %c0_i32 : i32, i32
  }
  func.func @transform_1(%arg0: i32) -> (i32, i32) {
    %c0_i32 = arith.constant 0 : i32
    %c0_i32_0 = arith.constant 0 : i32
    return %arg0, %c0_i32 : i32, i32
  }
  func.func @transform_2(%arg0: i32) -> (i32, i32) {
    %c0_i32 = arith.constant 0 : i32
    %c0_i32_0 = arith.constant 0 : i32
    return %arg0, %c0_i32 : i32, i32
  }
  func.func @transform_3(%arg0: i32) -> (i32, i32) {
    %c0_i32 = arith.constant 0 : i32
    %c0_i32_0 = arith.constant 0 : i32
    return %arg0, %c0_i32 : i32, i32
  }
}

</mosaic_0001>

<llo_original>
// kernel: laplacian_nll.1
$region0: #{laplacian_nll.1}
  #allocation0 [shape = 'u32[]', space=smem, size = 0x4, offset = 0x4, fixed_abs, tag = 'smem constant byte address 0x4 - core index']
  #allocation1 [shape = 'u32[144,128]{1,0:T(1,128)}', space=vmem, size = 0x12000, scoped, tag = 'internal scratch']
  %s0 = inlined_call_operand.vmem [shape: f32[8,128], index: 0, kind: input, shape index: {}]
  %s1 = inlined_call_operand.vmem [shape: f32[8,128], index: 1, kind: input, shape index: {}]
  %s2 = inlined_call_operand.vmem [shape: f32[8,128], index: 2, kind: input, shape index: {}]
  %s3 = inlined_call_operand.vmem [shape: f32[8,128], index: 3, kind: output, shape index: {}]
  %s4 = sld [smem:[#allocation0]]
  $region22: #{laplacian_nll.1} parent=0
    _
  %s6 = ssub.s32 1, %s4
  %s7 = scalar_select 0, %s6, %s4
  // Predicated region
  $region2: #{laplacian_nll.1} parent=0 // pred_check
    _
  $region3: #{laplacian_nll.1} parent=0 // pred_check_branch
    %9 = sbr.rel (0) target = $region5
  $region4: #{laplacian_nll.1} parent=0 // pred_region
    _
  $region5: #{laplacian_nll.1} parent=0 // pred_fallthru
    _
  // Predicated region
  $region6: #{laplacian_nll.1} parent=0 // pred_check
    _
  $region7: #{laplacian_nll.1} parent=0 // pred_check_branch
    %11 = sbr.rel (0) target = $region9
  $region8: #{laplacian_nll.1} parent=0 // pred_region
    _
  $region9: #{laplacian_nll.1} parent=0 // pred_fallthru
    _
  // Predicated region
  $region10: #{laplacian_nll.1} parent=0 // pred_check
    _
  $region11: #{laplacian_nll.1} parent=0 // pred_check_branch
    %13 = sbr.rel (0) target = $region13
  $region12: #{laplacian_nll.1} parent=0 // pred_region
    _
  $region13: #{laplacian_nll.1} parent=0 // pred_fallthru
    _
  %v14 = vld [vmem:[%s2] sm:$0xff]
  %v15 = vrcp.pop %v14
  %v16 = vmul.f32 %v14, 0.5
  %v17 = vlog2.pop %v16
  %v18 = vmul.f32 %v17, 0.6931472
  %v19 = vld [vmem:[%s1] sm:$0xff]
  %v20 = vld [vmem:[%s0] sm:$0xff]
  %v21 = vsub.f32 %v19, %v20
  %v22 = vand.u32 2147483647, %v21
  %v23 = vmul.f32 %v22, %v15
  %v24 = vadd.f32 %v18, %v23
  %v25 = vadd.f32 %v24, 0.0
  %26 = vst [vmem:[%s3] sm:$0xff] %v25
  // Predicated region
  $region14: #{laplacian_nll.1} parent=0 // pred_check
    _
  $region15: #{laplacian_nll.1} parent=0 // pred_check_branch
    %28 = sbr.rel (0) target = $region17
  $region16: #{laplacian_nll.1} parent=0 // pred_region
    _
  $region17: #{laplacian_nll.1} parent=0 // pred_fallthru
    _
  // Predicated region
  $region18: #{laplacian_nll.1} parent=0 // pred_check
    _
  $region19: #{laplacian_nll.1} parent=0 // pred_check_branch
    %30 = sbr.rel (0) target = $region21
  $region20: #{laplacian_nll.1} parent=0 // pred_region
    _
  $region21: #{laplacian_nll.1} parent=0 // pred_fallthru
    _

</llo_original>
